<compile_context>
chip_gen: v5e
topology: v5e:2x2
jax: 0.10.0
libtpu: 0.0.40
codegen_flags: <defaults>
</compile_context>

<pallas_src>
import jax
import jax.numpy as jnp
from jax.experimental import pallas as pl
from jax.experimental.pallas import tpu as pltpu

_VMEM_LIMIT = 32 * 1024 * 1024  # explicit scoped-VMEM cap; fits v5e/v6e/v7x


# --------------------------- embedding: row gather ---------------------------
def _embed_kernel(ids_ref, row_ref, out_ref):
    del ids_ref  # consumed by the index_maps only
    out_ref[...] = row_ref[...]


def embed_time_major(ids_bt, table):
    """ids: (B, T) int32, table: (V, H) f32 -> (T, B, H) f32 (time-major)."""
    B, T = ids_bt.shape
    V, H = table.shape
    N = T * B
    ids_tm = jnp.transpose(ids_bt, (1, 0)).reshape(N).astype(jnp.int32)
    ids_tm = jnp.clip(ids_tm, 0, V - 1)          # guard against OOB DMA
    table3 = table.reshape(V, 1, H)
    out = pl.pallas_call(
        _embed_kernel,
        out_shape=jax.ShapeDtypeStruct((N, 1, H), table.dtype),
        grid_spec=pltpu.PrefetchScalarGridSpec(
            num_scalar_prefetch=1,
            grid=(N,),
            in_specs=[pl.BlockSpec((1, 1, H), lambda i, ids: (ids[i], 0, 0))],
            out_specs=pl.BlockSpec((1, 1, H), lambda i, ids: (i, 0, 0)),
        ),
        compiler_params=pltpu.CompilerParams(
            dimension_semantics=("arbitrary",)),
    )(ids_tm, table3)
    return out.reshape(T, B, H)


# -------------------- input projection: one big gridded GEMM ----------------
def _inproj_kernel(x_ref, w_ref, b_ref, gi_ref):
    # x_ref: (C, tm, Hin)  w_ref: (1, C, Hin, 3H)  b_ref: (1, 1, 3H)  gi_ref: (1, tm, 3H)
    c_chunks = x_ref.shape[0]
    acc = jnp.dot(x_ref[0], w_ref[0, 0], preferred_element_type=jnp.float32)
    for c in range(1, c_chunks):
        acc = acc + jnp.dot(x_ref[c], w_ref[0, c],
                            preferred_element_type=jnp.float32)
    gi_ref[0] = acc + b_ref[0]


def input_projection(x_flat, w_pack, b_pack):
    """x_flat: (C, N, Hin); w_pack: (2, C, Hin, 3H); b_pack: (2, 1, 3H)
       -> gi: (2, N, 3H), gi[d] = sum_c x_flat[c] @ w_pack[d, c] + b_pack[d]."""
    C, N, Hin = x_flat.shape
    H3 = w_pack.shape[-1]
    n8 = ((N + 7) // 8) * 8
    tm = min(256, n8)
    n_pad = ((N + tm - 1) // tm) * tm
    if n_pad != N:
        x_flat = jnp.pad(x_flat, ((0, 0), (0, n_pad - N), (0, 0)))
    gi = pl.pallas_call(
        _inproj_kernel,
        out_shape=jax.ShapeDtypeStruct((2, n_pad, H3), jnp.float32),
        grid_spec=pltpu.PrefetchScalarGridSpec(
            num_scalar_prefetch=0,
            grid=(2, n_pad // tm),
            in_specs=[
                pl.BlockSpec((C, tm, Hin), lambda d, m: (0, m, 0)),
                pl.BlockSpec((1, C, Hin, H3), lambda d, m: (d, 0, 0, 0)),
                pl.BlockSpec((1, 1, H3), lambda d, m: (d, 0, 0)),
            ],
            out_specs=pl.BlockSpec((1, tm, H3), lambda d, m: (d, m, 0)),
        ),
        compiler_params=pltpu.CompilerParams(
            dimension_semantics=("parallel", "parallel"),
            vmem_limit_bytes=_VMEM_LIMIT),
    )(x_flat, w_pack, b_pack)
    if n_pad != N:
        gi = gi[:, :N]
    return gi


# ----------------- fused bidirectional GRU recurrence (grid over T) ----------
def _bigru_step_kernel(gi_ref, whh_ref, bhh_ref, out_ref, hn_ref, h_scr):
    H = hn_ref.shape[-1]

    @pl.when(pl.program_id(1) == 0)
    def _():
        h_scr[...] = jnp.zeros_like(h_scr)   # h0 = zeros (matches init_hidden)

    h_prev = h_scr[...]                      # (B, H)
    gi = gi_ref[0, 0]                        # (B, 3H)  precomputed x @ W_ih + b_ih
    gh = jnp.dot(h_prev, whh_ref[0],
                 preferred_element_type=jnp.float32) + bhh_ref[0]   # (B, 3H)
    r = jax.nn.sigmoid(gi[:, 0:H] + gh[:, 0:H])
    z = jax.nn.sigmoid(gi[:, H:2 * H] + gh[:, H:2 * H])
    n = jnp.tanh(gi[:, 2 * H:3 * H] + r * gh[:, 2 * H:3 * H])
    h_new = (1.0 - z) * n + z * h_prev
    h_scr[...] = h_new
    out_ref[0, 0] = h_new
    hn_ref[0] = h_new                        # final write (t == T-1) is the one kept


def bigru_recurrence(gi, w_hh, b_hh):
    """gi: (2, T, B, 3H); w_hh: (2, H, 3H); b_hh: (2, 1, 3H)
       -> out: (2, T, B, H) (bwd already aligned to input time), hn: (2, B, H)."""
    _, T, B, H3 = gi.shape
    H = H3 // 3

    def time_map(d, t):                      # d=0: t ; d=1: T-1-t  (backward pass)
        return t + d * (T - 1 - 2 * t)

    out, hn = pl.pallas_call(
        _bigru_step_kernel,
        out_shape=(jax.ShapeDtypeStruct((2, T, B, H), jnp.float32),
                   jax.ShapeDtypeStruct((2, B, H), jnp.float32)),
        grid_spec=pltpu.PrefetchScalarGridSpec(
            num_scalar_prefetch=0,
            grid=(2, T),
            in_specs=[
                pl.BlockSpec((1, 1, B, H3), lambda d, t: (d, time_map(d, t), 0, 0)),
                pl.BlockSpec((1, H, H3), lambda d, t: (d, 0, 0)),
                pl.BlockSpec((1, 1, H3), lambda d, t: (d, 0, 0)),
            ],
            out_specs=(
                pl.BlockSpec((1, 1, B, H), lambda d, t: (d, time_map(d, t), 0, 0)),
                pl.BlockSpec((1, B, H), lambda d, t: (d, 0, 0)),
            ),
            scratch_shapes=[pltpu.VMEM((B, H), jnp.float32)],
        ),
        compiler_params=pltpu.CompilerParams(
            dimension_semantics=("parallel", "arbitrary"),
            vmem_limit_bytes=_VMEM_LIMIT),
        cost_estimate=pl.CostEstimate(
            flops=2 * T * (2 * B * H * H3),
            transcendentals=2 * T * (3 * B * H),
            bytes_accessed=4 * (gi.size + 2 * T * B * H + 2 * B * H
                                + 2 * (w_hh.size + b_hh.size)),
        ),
    )(gi, w_hh, b_hh)
    return out, hn


# ------------------------------ parameters -----------------------------------
def init_encoder_params(key, vocab_size, hidden_size, num_layers, pad_token_id):
    """PyTorch-layout params: weight_ih (3H, Din), weight_hh (3H, H), biases (3H,)."""
    params = {}
    k_emb, key = jax.random.split(key)
    emb = jax.random.normal(k_emb, (vocab_size, hidden_size), jnp.float32) * 0.02
    emb = emb.at[pad_token_id].set(0.0)       # padding_idx row is zero
    params["embedding"] = emb

    bound = 1.0 / float(hidden_size) ** 0.5
    layers = []
    for layer in range(num_layers):
        din = hidden_size if layer == 0 else 2 * hidden_size
        dirs = []
        for _ in range(2):                    # forward, backward
            key, k1, k2, k3, k4 = jax.random.split(key, 5)
            dirs.append(dict(
                w_ih=jax.random.uniform(k1, (3 * hidden_size, din),
                                        jnp.float32, -bound, bound),
                w_hh=jax.random.uniform(k2, (3 * hidden_size, hidden_size),
                                        jnp.float32, -bound, bound),
                b_ih=jax.random.uniform(k3, (3 * hidden_size,),
                                        jnp.float32, -bound, bound),
                b_hh=jax.random.uniform(k4, (3 * hidden_size,),
                                        jnp.float32, -bound, bound),
            ))
        layers.append(dirs)
    params["gru"] = layers
    return params


def pack_encoder_params(params):
    """One-time packing: transpose weights and stack the two directions so the
    forward pass issues contiguous HBM->VMEM weight DMAs (no per-call .T)."""
    H = params["embedding"].shape[1]
    packed = {"embedding": params["embedding"], "layers": []}
    for layer_dirs in params["gru"]:
        din = layer_dirs[0]["w_ih"].shape[1]
        C = din // H                                   # 1 for layer 0, else 2
        w_ih = jnp.stack([d["w_ih"].T.reshape(C, H, 3 * H) for d in layer_dirs])
        b_ih = jnp.stack([d["b_ih"].reshape(1, 3 * H) for d in layer_dirs])
        w_hh = jnp.stack([d["w_hh"].T for d in layer_dirs])
        b_hh = jnp.stack([d["b_hh"].reshape(1, 3 * H) for d in layer_dirs])
        packed["layers"].append(dict(w_ih=w_ih, b_ih=b_ih, w_hh=w_hh, b_hh=b_hh))
    return packed


# ------------------------------- forward --------------------------------------
def encoder_forward(packed, ids):
    """ids: (B, T) int32 -> (x: (B, T, 2H), hn: (num_layers, B, H)).  Eval mode."""
    B, T = ids.shape
    H = packed["embedding"].shape[1]
    L = len(packed["layers"])

    # Pad batch to a sublane multiple (>=8) so (B, *) tiles are dense; padded
    # rows use token 0 and are sliced away at the end.
    Bp = max(8, ((B + 7) // 8) * 8)
    if Bp != B:
        ids = jnp.pad(ids, ((0, Bp - B), (0, 0)))
    N = T * Bp

    # Embedding gather. Dropout layers are identity in eval mode.
    # TODO(synk): training-mode dropout (embedding + inter-layer GRU dropout) not modeled.
    emb = embed_time_major(ids, packed["embedding"])      # (T, Bp, H)
    x_flat = emb.reshape(1, N, H)                         # chunk-stacked layer input

    hn_per_dir = []
    out_stacked = None
    for lp in packed["layers"]:
        gi = input_projection(x_flat, lp["w_ih"], lp["b_ih"])    # (2, N, 3H)
        gi = gi.reshape(2, T, Bp, 3 * H)
        out_stacked, hn = bigru_recurrence(gi, lp["w_hh"], lp["b_hh"])
        hn_per_dir.extend([hn[0], hn[1]])                        # fwd, bwd
        x_flat = out_stacked.reshape(2, N, H)                    # next layer input (no concat)

    # User-facing layout: x is (B, T, 2H) with [fwd, bwd] on the last dim;
    # hn matches torch's hn.view(2, -1, B, H).sum(0).
    x_out = jnp.transpose(out_stacked, (2, 1, 0, 3)).reshape(Bp, T, 2 * H)[:B]
    hn = jnp.stack(hn_per_dir, axis=0).reshape(2, L, Bp, H).sum(axis=0)[:, :B]
    return x_out, hn


if __name__ == "__main__":
    VOCAB, HIDDEN, LAYERS, PAD = 16, 32, 2, 0
    B, T = 2, 8

    key = jax.random.PRNGKey(0)
    k_ids, k_params = jax.random.split(key)
    ids = jax.random.randint(k_ids, (B, T), 0, VOCAB, dtype=jnp.int32)
    params = init_encoder_params(k_params, VOCAB, HIDDEN, LAYERS, PAD)
    packed = pack_encoder_params(params)

    x_out, hn = encoder_forward(packed, ids)
    jax.block_until_ready((x_out, hn))

    assert x_out.shape == (B, T, 2 * HIDDEN)
    assert hn.shape == (LAYERS, B, HIDDEN)
    assert bool(jnp.all(jnp.isfinite(x_out))) and bool(jnp.all(jnp.isfinite(hn)))
    print("KERNEL_OK")
</pallas_src>

<mosaic_0001>
module attributes {stable_mosaic.version = 11 : i64} {
  func.func @_embed_kernel(%arg0: i32, %arg1: memref<64xi32, #tpu.memory_space<smem>>, %arg2: memref<1x1x32xf32, #tpu.memory_space<vmem>>, %arg3: memref<1x1x32xf32, #tpu.memory_space<vmem>>) attributes {dimension_semantics = [#tpu.dimension_semantics<arbitrary>], iteration_bounds = array<i64: 64>, scalar_prefetch = 1 : i64, scratch_operands = 0 : i64, tpu.core_type = #tpu.core_type<tc>, window_params = [{transform_indices = @transform_0, window_bounds = array<i64: 1, 1, 32>}, {transform_indices = @transform_1, window_bounds = array<i64: 1, 1, 32>}]} {
    %c0 = arith.constant 0 : index
    %c0_0 = arith.constant 0 : index
    %c0_1 = arith.constant 0 : index
    %0 = vector.load %arg2[%c0, %c0_0, %c0_1] : memref<1x1x32xf32, #tpu.memory_space<vmem>>, vector<1x1x32xf32>
    %c0_2 = arith.constant 0 : index
    %c0_3 = arith.constant 0 : index
    %c0_4 = arith.constant 0 : index
    %1 = vector.load %arg3[%c0_2, %c0_3, %c0_4] : memref<1x1x32xf32, #tpu.memory_space<vmem>>, vector<1x1x32xf32>
    tpu.vector_store %arg3[%c0_2, %c0_3, %c0_4], %0 {strides = array<i32>} : memref<1x1x32xf32, #tpu.memory_space<vmem>>, vector<1x1x32xf32>,
    return
  }
  func.func @transform_0(%arg0: i32, %arg1: memref<64xi32, #tpu.memory_space<smem>>) -> (i32, i32, i32) {
    %0 = arith.index_cast %arg0 : i32 to index
    %1 = memref.load %arg1[%0] : memref<64xi32, #tpu.memory_space<smem>>
    %c0_i32 = arith.constant 0 : i32
    %c0_i32_0 = arith.constant 0 : i32
    %c0_i32_1 = arith.constant 0 : i32
    return %1, %c0_i32, %c0_i32_0 : i32, i32, i32
  }
  func.func @transform_1(%arg0: i32, %arg1: memref<64xi32, #tpu.memory_space<smem>>) -> (i32, i32, i32) {
    %c0_i32 = arith.constant 0 : i32
    %c0_i32_0 = arith.constant 0 : i32
    %c0_i32_1 = arith.constant 0 : i32
    return %arg0, %c0_i32, %c0_i32_0 : i32, i32, i32
  }
}

</mosaic_0001>

<llo_original>
// kernel: tpu_custom_call.1
$region0: #{tpu_custom_call.1}
  #allocation0 [shape = 'u32[]', space=smem, size = 0x4, offset = 0x4, fixed_abs, tag = 'smem constant byte address 0x4 - core index']
  #allocation1 [shape = 'u32[72,128]{1,0:T(1,128)}', space=vmem, size = 0x9000, scoped, tag = 'internal scratch']
  #allocation2 [shape = 's32[1]{0}', space=sflag, size = 0x4, scoped, tag = 'scoped memory for tpu_custom_call.1']
  #allocation3 [shape = 'u8[512]{0}', space=smem, size = 0x200, scoped, tag = 'prefetched SMEM operand 0']
  %s0 = inlined_call_operand.hbm [shape: s32[64], index: 0, kind: input, shape index: {}]
  %s1 = inlined_call_operand.hbm [shape: f32[16,1,32], index: 1, kind: input, shape index: {}]
  %s2 = inlined_call_operand.vmem [shape: f32[64,1,32], index: 2, kind: output, shape index: {}]
  %s3 = sld [smem:[#allocation0]]
  $region41: #{tpu_custom_call.1} parent=0
    _
  %s5 = ssub.s32 1, %s3
  %s6 = scalar_select 0, %s5, %s3
  %s8 = sshll.u32 %s0, 4
  %s9 = int_to_ptr.hbm [resolvable:$true] %s8
  %11 = dma.hbm_to_smem %s9, 16, [#allocation3], [#allocation2]
  %13 = dma.done [#allocation2], 16
  %14 = sfence
  $region1: #{tpu_custom_call.1} parent=0
    #allocation4 [shape = 'u8[1024]{0}', space=vmem, size = 0x400, scoped, tag = 'input window, operand 1']
    #allocation5 [shape = 's32[2]{0}', space=sflag, size = 0x8, scoped, tag = 'scoped memory for tpu_custom_call.1']
    %15 = vsyncpa [#allocation5], 0
    %s16 = scalar_lea.sflag [#allocation5], 1
    %17 = vsyncpa %s16, 0
    loop: start=0, step=1, limit=66
    $region2: #{tpu_custom_call.1} parent=1 // loop_pre_header
      _
    $region3: #{tpu_custom_call.1} parent=1 // loop_header
      %s19 = sphi 0, %s23
      %p20 = scmp.ge.s32.totalorder %s19, 66
      %s31 = sphi 0, %s33
      %s34 = sphi 0, %s31
      %s35 = sphi 0, %s34
      %s51 = sphi 0, %s35
      %s57 = sphi 0, %s59
      %s60 = sphi 0, %s57
      %s61 = sphi 0, %s60
      %s77 = sphi 0, %s61
    $region4: #{tpu_custom_call.1} parent=1 // loop_header_branch
      %22 = sbr.rel (%p20) target = $region8
    $region5: #{tpu_custom_call.1} parent=1 // loop_body
      %s24 = ssub.s32 %s19, 1
      %s25 = ssub.s32 %s19, 2
      %s26 = sadd.s32 %s19, 1
      %s27 = sld [smem:[#allocation3 + %s19]]
      %s28 = sld [smem:[#allocation3 + %s26]]
      %s29 = ssub.s32 %s27, %s28
      %p30 = scmp.eq.s32.totalorder %s29, 0
      %s32 = sadd.s32 %s31, 1
      %s33 = scalar_select %p30, %s31, %s32
      %p36 = pneg %p30
      %p37 = scmp.eq.s32.totalorder %s19, 63
      %p38 = por %p36, %p37
      %p39 = scmp.ne.s32.totalorder %s31, %s34
      %p40 = scmp.eq.s32.totalorder %s19, 0
      %p41 = por %p39, %p40
      %p42 = scmp.ne.s32.totalorder %s31, %s34
      %p43 = scmp.eq.s32.totalorder %s24, 63
      %p44 = por %p42, %p43
      %p45 = scmp.ne.s32.totalorder %s34, %s35
      %p46 = scmp.eq.s32.totalorder %s24, 0
      %p47 = por %p45, %p46
      %p48 = scmp.ne.s32.totalorder %s34, %s35
      %p49 = scmp.eq.s32.totalorder %s25, 63
      %p50 = por %p48, %p49
      %p52 = scmp.ne.s32.totalorder %s35, %s51
      %p53 = scmp.eq.s32.totalorder %s25, 0
      %p54 = por %p52, %p53
      %s55 = ssub.s32 %s19, %s26
      %p56 = scmp.eq.s32.totalorder %s55, 0
      %s58 = sadd.s32 %s57, 1
      %s59 = scalar_select %p56, %s57, %s58
      %p62 = pneg %p56
      %p63 = scmp.eq.s32.totalorder %s19, 63
      %p64 = por %p62, %p63
      %p65 = scmp.ne.s32.totalorder %s57, %s60
      %p66 = scmp.eq.s32.totalorder %s19, 0
      %p67 = por %p65, %p66
      %p68 = scmp.ne.s32.totalorder %s57, %s60
      %p69 = scmp.eq.s32.totalorder %s24, 63
      %p70 = por %p68, %p69
      %p71 = scmp.ne.s32.totalorder %s60, %s61
      %p72 = scmp.eq.s32.totalorder %s24, 0
      %p73 = por %p71, %p72
      %p74 = scmp.ne.s32.totalorder %s60, %s61
      %p75 = scmp.eq.s32.totalorder %s25, 63
      %p76 = por %p74, %p75
      %p78 = scmp.ne.s32.totalorder %s61, %s77
      %p79 = scmp.eq.s32.totalorder %s25, 0
      %p80 = por %p78, %p79
      %p81 = scmp.le.s32.totalorder 1, %s19
      %p82 = scmp.lt.s32.totalorder %s19, 65
      %p83 = pnand %p81, %p82
      %p84 = pneg %p83
      // Predicated region
      $region9: #{tpu_custom_call.1} parent=5 // pred_check
        _
      $region10: #{tpu_custom_call.1} parent=5 // pred_check_branch
        %86 = sbr.rel (%p83) target = $region12
      $region11: #{tpu_custom_call.1} parent=5 // pred_region
        %s87 = ssub.s32 %s19, 1
      $region12: #{tpu_custom_call.1} parent=5 // pred_fallthru
        _
      %p88 = scmp.lt.s32.totalorder %s19, 64
      // Predicated region
      $region13: #{tpu_custom_call.1} parent=5 // pred_check
        %p89 = pneg %p88
      $region14: #{tpu_custom_call.1} parent=5 // pred_check_branch
        %91 = sbr.rel (%p89) target = $region16
      $region15: #{tpu_custom_call.1} parent=5 // pred_region
        // Predicated region
        $region17: #{tpu_custom_call.1} parent=15 // pred_check
          %p92 = pneg %p41
        $region18: #{tpu_custom_call.1} parent=15 // pred_check_branch
          %94 = sbr.rel (%p92) target = $region20
        $region19: #{tpu_custom_call.1} parent=15 // pred_region
          %s95 = sand.u32 %s31, 1
          %s96 = scalar_lea.sflag [#allocation5], %s95
          %s97 = sand.u32 %s31, 1
          %s98 = scalar_lea.vmem [#allocation4], %s97
          %s99 = sld [smem:[#allocation3 + %s19]]
          %101 = vsyncadd %s96, 0
          %s102 = scalar_lea.hbm %s1, %s99
          %s104 = sshll.u32 %s102, 4
          %s105 = int_to_ptr.hbm [resolvable:$true] %s104
          %s106 = sshll.u32 %s98, 4
          %s107 = int_to_ptr.vmem [resolvable:$true] %s106
          %109 = dma.hbm_to_vmem [thread:$0]  %s105, 16, %s107, %s96
        $region20: #{tpu_custom_call.1} parent=15 // pred_fallthru
          _
      $region16: #{tpu_custom_call.1} parent=5 // pred_fallthru
        _
      %p110 = scmp.le.s32.totalorder 1, %s19
      %p111 = scmp.lt.s32.totalorder %s19, 65
      %p112 = pnand %p110, %p111
      %p113 = pneg %p112
      // Predicated region
      $region21: #{tpu_custom_call.1} parent=5 // pred_check
        _
      $region22: #{tpu_custom_call.1} parent=5 // pred_check_branch
        %115 = sbr.rel (%p112) target = $region24
      $region23: #{tpu_custom_call.1} parent=5 // pred_region
        %s116 = ssub.s32 %s19, 1
        %s117 = sand.u32 %s34, 1
        %s118 = scalar_lea.sflag [#allocation5], %s117
        %s119 = sand.u32 %s34, 1
        %s120 = scalar_lea.vmem [#allocation4], %s119
        // Predicated region
        $region25: #{tpu_custom_call.1} parent=23 // pred_check
          %p121 = pneg %p47
        $region26: #{tpu_custom_call.1} parent=23 // pred_check_branch
          %123 = sbr.rel (%p121) target = $region28
        $region27: #{tpu_custom_call.1} parent=23 // pred_region
          %125 = dma.done %s118, 16
        $region28: #{tpu_custom_call.1} parent=23 // pred_fallthru
          _
        %s126 = sand.u32 %s34, 1
        %s127 = scalar_lea.sflag [#allocation5], %s126
        %s128 = sand.u32 %s34, 1
        %s129 = scalar_lea.vmem [#allocation4], %s128
        %p130 = pneg %p47
        %p131 = pneg %p44
        %p132 = pneg %p73
        %p133 = pneg %p70
        %p134 = scmp.lt.s32.totalorder %s24, 63
        %s135 = scalar_select %p134, %s24, 63
        %s136 = scalar_lea.vmem %s2, %s135
        %s137 = sld [smem:[#allocation3 + %s24]]
        %p138 = scmp.lt.s32.totalorder %s24, 63
        %s139 = scalar_select %p138, %s24, 63
        %s140 = scalar_lea.vmem %s2, %s139
        %v141 = vld [vmem:[%s120] sm:$0x1]
        %vm142 = vcmask 253952
        %143 = vst.msk [vmem:[%s140] sm:$0x1] %vm142, %v141
        %p144 = scmp.lt.s32.totalorder %s24, 63
        %s145 = scalar_select %p144, %s24, 63
        %s146 = scalar_lea.vmem %s2, %s145
        // Predicated region
        $region29: #{tpu_custom_call.1} parent=23 // pred_check
          %p147 = pneg %p70
        $region30: #{tpu_custom_call.1} parent=23 // pred_check_branch
          %149 = sbr.rel (%p147) target = $region32
        $region31: #{tpu_custom_call.1} parent=23 // pred_region
          _
        $region32: #{tpu_custom_call.1} parent=23 // pred_fallthru
          _
      $region24: #{tpu_custom_call.1} parent=5 // pred_fallthru
        _
      %p150 = scmp.le.s32.totalorder 2, %s19
      // Predicated region
      $region33: #{tpu_custom_call.1} parent=5 // pred_check
        %p151 = pneg %p150
      $region34: #{tpu_custom_call.1} parent=5 // pred_check_branch
        %153 = sbr.rel (%p151) target = $region36
      $region35: #{tpu_custom_call.1} parent=5 // pred_region
        %s154 = ssub.s32 %s19, 2
        // Predicated region
        $region37: #{tpu_custom_call.1} parent=35 // pred_check
          %p155 = pneg %p76
        $region38: #{tpu_custom_call.1} parent=35 // pred_check_branch
          %157 = sbr.rel (%p155) target = $region40
        $region39: #{tpu_custom_call.1} parent=35 // pred_region
          %p158 = scmp.lt.s32.totalorder %s25, 63
          %s159 = scalar_select %p158, %s25, 63
          %s160 = scalar_lea.vmem %s2, %s159
        $region40: #{tpu_custom_call.1} parent=35 // pred_fallthru
          _
      $region36: #{tpu_custom_call.1} parent=5 // pred_fallthru
        _
    $region6: #{tpu_custom_call.1} parent=1 // loop_footer
      %s23 = sadd.s32 1, %s19
    $region7: #{tpu_custom_call.1} parent=1 // loop_footer_branch
      %18 = sbr.rel target = $region3
    $region8: #{tpu_custom_call.1} parent=1 // loop_exit
      _
    %161 = vsyncpa [#allocation5], 1
    %s162 = scalar_lea.sflag [#allocation5], 1
    %163 = vsyncpa %s162, 1

</llo_original>
